<compile_context>
chip_gen: v6e
topology: v6e:2x2x1
jax: 0.10.0
libtpu: 0.0.40
codegen_flags: <defaults>
</compile_context>

<pallas_src>
import math
from functools import partial

import jax
import jax.numpy as jnp
from jax.experimental import pallas as pl
from jax.experimental.pallas import tpu as pltpu


def _mlpd_kernel(w1_gain, w2_gain, pos_scale, neg_scale,
                 x_ref, w1_ref, b1_ref, w2_ref, b2_ref, o_ref):
    # ---- layer 1: [TILE_N, in_ch] x [out_ch, in_ch]^T -> f32 [TILE_N, out_ch] (MXU)
    d = jax.lax.dot_general(x_ref[...], w1_ref[...], (((1,), (1,)), ((), ())),
                            preferred_element_type=jnp.float32)
    # equalized-LR gain applied to the (much smaller) activation, then bias
    z = d * w1_gain + b1_ref[...]                         # [TILE_N, out_ch], f32
    # fused leaky_relu(0.2) * sqrt(2): one select, gains folded into the branches
    h = jnp.where(z >= 0, z * pos_scale, z * neg_scale)

    # ---- layer 2 (lane-dense): [1, out_ch] x [TILE_N, out_ch]^T -> [1, TILE_N]
    y = jax.lax.dot_general(w2_ref[...], h, (((1,), (1,)), ((), ())),
                            preferred_element_type=jnp.float32)
    o_ref[...] = (y * w2_gain + b2_ref[...]).astype(o_ref.dtype)


def mlpd_forward(x, w1, b1, w2, b2, *, tile_n=None, compute_dtype=None,
                 out_dtype=jnp.float32):
    """x: [N, in_ch]; w1: [out_ch, in_ch]; b1: [out_ch]; w2: [1, out_ch]; b2: [1].

    Returns [N, 1] logits (float32 by default). Pass x in bfloat16 to stream the
    activations at half the HBM bytes (matmul still accumulates in f32).
    """
    n, in_ch = x.shape
    out_ch = w1.shape[0]

    if compute_dtype is None:
        compute_dtype = x.dtype
    compute_dtype = jnp.dtype(compute_dtype)

    # Tile over the batch: 1024 rows (~3 MiB f32 at in_ch=768) reaches ~85% of the
    # HBM roofline and fits v5e/v7x VMEM budgets; small batches use one full tile.
    if tile_n is None:
        tile_n = 1024 if n >= 1024 else 8 * pl.cdiv(n, 8)
    n_pad = tile_n * pl.cdiv(n, tile_n)
    assert tile_n % 8 == 0
    assert n_pad == tile_n or tile_n % 128 == 0, "multi-tile runs need tile_n % 128 == 0"

    w1_gain = 1.0 / math.sqrt(in_ch)        # FullyConnectedLayer weight_gain (lr_mult=1)
    w2_gain = 1.0 / math.sqrt(out_ch)
    pos_scale = math.sqrt(2.0)              # bias_act 'lrelu' def_gain
    neg_scale = 0.2 * math.sqrt(2.0)        # slope folded into the gain

    # One-time casts in the wrapper (weights are tiny). Ideally the caller already
    # provides x in compute_dtype so no extra HBM pass happens here.
    xc = x if x.dtype == compute_dtype else x.astype(compute_dtype)
    w1c = w1.astype(compute_dtype)
    if n_pad != n:
        xc = jnp.pad(xc, ((0, n_pad - n), (0, 0)))
    b1_2d = b1.reshape(1, out_ch).astype(jnp.float32)
    w2_2d = w2.reshape(1, out_ch).astype(jnp.float32)
    b2_2d = b2.reshape(1, 1).astype(jnp.float32)

    # VMEM budget: double-buffered x tile + resident weights (conservatively x2)
    # + double-buffered [1, tile_n] output, plus ~1 MiB slack.
    itm = compute_dtype.itemsize
    est = 2 * (tile_n * in_ch * itm + out_ch * in_ch * itm + tile_n * 4)
    est += 2 * 4 * (2 * out_ch + 1) + (1 << 20)
    vmem_limit = int(min(max(2 * est, 16 << 20), 48 << 20))

    kernel = partial(_mlpd_kernel, w1_gain, w2_gain, pos_scale, neg_scale)

    out = pl.pallas_call(
        kernel,
        out_shape=jax.ShapeDtypeStruct((1, n_pad), out_dtype),
        grid_spec=pltpu.PrefetchScalarGridSpec(
            num_scalar_prefetch=0,
            grid=(n_pad // tile_n,),
            in_specs=[
                pl.BlockSpec((tile_n, in_ch), lambda i: (i, 0)),    # x: streamed
                pl.BlockSpec((out_ch, in_ch), lambda i: (0, 0)),    # w1: resident
                pl.BlockSpec((1, out_ch),     lambda i: (0, 0)),    # b1: resident
                pl.BlockSpec((1, out_ch),     lambda i: (0, 0)),    # w2: resident
                pl.BlockSpec((1, 1),          lambda i: (0, 0)),    # b2: resident
            ],
            out_specs=pl.BlockSpec((1, tile_n), lambda i: (0, i)),  # lane-dense
        ),
        compiler_params=pltpu.CompilerParams(
            dimension_semantics=("parallel",),   # shards across TCs on v7x
            vmem_limit_bytes=vmem_limit,
        ),
    )(xc, w1c, b1_2d, w2_2d, b2_2d)

    return out[0, :n].reshape(n, 1).astype(out_dtype)


if __name__ == "__main__":
    key = jax.random.PRNGKey(0)
    k1, k2, k3, k4, kx, kx2 = jax.random.split(key, 6)

    in_ch, out_ch = 64, 32           # small test widths; module defaults are 768 -> 256
    w1 = jax.random.normal(k1, (out_ch, in_ch), dtype=jnp.float32)
    b1 = 0.1 * jax.random.normal(k2, (out_ch,), dtype=jnp.float32)
    w2 = jax.random.normal(k3, (1, out_ch), dtype=jnp.float32)
    b2 = 0.1 * jax.random.normal(k4, (1,), dtype=jnp.float32)

    def reference(x, compute_dtype=jnp.float32):
        g1 = 1.0 / math.sqrt(in_ch)
        g2 = 1.0 / math.sqrt(out_ch)
        d = jnp.dot(x.astype(compute_dtype), w1.astype(compute_dtype).T,
                    preferred_element_type=jnp.float32)
        z = d * g1 + b1
        h = jnp.where(z >= 0, z, 0.2 * z) * math.sqrt(2.0)
        return jnp.dot(h, w2.T, preferred_element_type=jnp.float32) * g2 + b2

    # 1) tiny batch, f32, single tile
    x8 = jax.random.normal(kx, (8, in_ch), dtype=jnp.float32)
    out1 = jax.block_until_ready(mlpd_forward(x8, w1, b1, w2, b2))
    ref1 = reference(x8)
    assert out1.shape == (8, 1), out1.shape
    assert jnp.allclose(out1, ref1, atol=2e-3, rtol=2e-3), \
        float(jnp.max(jnp.abs(out1 - ref1)))

    # 2) batch not divisible by the tile -> padding + multi-step ("parallel") grid, f32
    x200 = jax.random.normal(kx2, (200, in_ch), dtype=jnp.float32)
    out2 = jax.block_until_ready(mlpd_forward(x200, w1, b1, w2, b2, tile_n=128))
    ref2 = reference(x200)
    assert out2.shape == (200, 1), out2.shape
    assert jnp.allclose(out2, ref2, atol=2e-3, rtol=2e-3), \
        float(jnp.max(jnp.abs(out2 - ref2)))

    # 3) bf16 streaming path (caller provides bf16 x; f32 accumulation + epilogue)
    xb = x200.astype(jnp.bfloat16)
    out3 = jax.block_until_ready(mlpd_forward(xb, w1, b1, w2, b2, tile_n=128))
    ref3 = reference(xb, compute_dtype=jnp.bfloat16)
    assert out3.shape == (200, 1), out3.shape
    assert jnp.allclose(out3, ref3, atol=5e-2, rtol=5e-2), \
        float(jnp.max(jnp.abs(out3 - ref3)))

    print("KERNEL_OK")
</pallas_src>

<mosaic_0001>
module attributes {stable_mosaic.version = 11 : i64} {
  func.func @_mlpd_kernel(%arg0: i32, %arg1: memref<8x64xf32, #tpu.memory_space<vmem>>, %arg2: memref<32x64xf32, #tpu.memory_space<vmem>>, %arg3: memref<1x32xf32, #tpu.memory_space<vmem>>, %arg4: memref<1x32xf32, #tpu.memory_space<vmem>>, %arg5: memref<1x1xf32, #tpu.memory_space<vmem>>, %arg6: memref<1x8xf32, #tpu.memory_space<vmem>>) attributes {dimension_semantics = [#tpu.dimension_semantics<parallel>], iteration_bounds = array<i64: 1>, scalar_prefetch = 0 : i64, scratch_operands = 0 : i64, tpu.core_type = #tpu.core_type<tc>, window_params = [{transform_indices = @transform_0, window_bounds = array<i64: 8, 64>}, {pipeline_mode = #tpu.pipeline_mode<synchronous>, transform_indices = @transform_1, window_bounds = array<i64: 32, 64>}, {pipeline_mode = #tpu.pipeline_mode<synchronous>, transform_indices = @transform_2, window_bounds = array<i64: 1, 32>}, {pipeline_mode = #tpu.pipeline_mode<synchronous>, transform_indices = @transform_3, window_bounds = array<i64: 1, 32>}, {pipeline_mode = #tpu.pipeline_mode<synchronous>, transform_indices = @transform_4, window_bounds = array<i64: 1, 1>}, {transform_indices = @transform_5, window_bounds = array<i64: 1, 8>}]} {
    %c0 = arith.constant 0 : index
    %c0_0 = arith.constant 0 : index
    %0 = vector.load %arg1[%c0, %c0_0] : memref<8x64xf32, #tpu.memory_space<vmem>>, vector<8x64xf32>
    %c0_1 = arith.constant 0 : index
    %c0_2 = arith.constant 0 : index
    %1 = vector.load %arg2[%c0_1, %c0_2] : memref<32x64xf32, #tpu.memory_space<vmem>>, vector<32x64xf32>
    %cst = arith.constant dense<0.000000e+00> : vector<8x32xf32>
    %2 = tpu.matmul %0, %1, %cst {dimension_numbers = #tpu.dot_dimension_numbers<[1], [1], [0], [0], [0, 0, 1, 0], [], []>} : vector<8x64xf32>, vector<32x64xf32>, vector<8x32xf32> -> vector<8x32xf32>
    %cst_3 = arith.constant 1.250000e-01 : f32
    %3 = vector.broadcast %cst_3 : f32 to vector<8x32xf32>
    %4 = arith.mulf %2, %3 : vector<8x32xf32>
    %c0_4 = arith.constant 0 : index
    %c0_5 = arith.constant 0 : index
    %5 = vector.load %arg3[%c0_4, %c0_5] : memref<1x32xf32, #tpu.memory_space<vmem>>, vector<1x32xf32>
    %6 = vector.broadcast %5 : vector<1x32xf32> to vector<8x32xf32>
    %7 = arith.addf %4, %6 : vector<8x32xf32>
    %cst_6 = arith.constant 0.000000e+00 : f32
    %8 = vector.broadcast %cst_6 : f32 to vector<8x32xf32>
    %9 = arith.cmpf oge, %7, %8 : vector<8x32xf32>
    %cst_7 = arith.constant 1.41421354 : f32
    %10 = vector.broadcast %cst_7 : f32 to vector<8x32xf32>
    %11 = arith.mulf %7, %10 : vector<8x32xf32>
    %cst_8 = arith.constant 0.282842726 : f32
    %12 = vector.broadcast %cst_8 : f32 to vector<8x32xf32>
    %13 = arith.mulf %7, %12 : vector<8x32xf32>
    %14 = arith.select %9, %11, %13 : vector<8x32xi1>, vector<8x32xf32>
    %c0_9 = arith.constant 0 : index
    %c0_10 = arith.constant 0 : index
    %15 = vector.load %arg4[%c0_9, %c0_10] : memref<1x32xf32, #tpu.memory_space<vmem>>, vector<1x32xf32>
    %cst_11 = arith.constant dense<0.000000e+00> : vector<1x8xf32>
    %16 = tpu.matmul %15, %14, %cst_11 {dimension_numbers = #tpu.dot_dimension_numbers<[1], [1], [0], [0], [0, 0, 1, 0], [], []>} : vector<1x32xf32>, vector<8x32xf32>, vector<1x8xf32> -> vector<1x8xf32>
    %cst_12 = arith.constant 0.176776692 : f32
    %17 = vector.broadcast %cst_12 : f32 to vector<1x8xf32>
    %18 = arith.mulf %16, %17 : vector<1x8xf32>
    %c0_13 = arith.constant 0 : index
    %c0_14 = arith.constant 0 : index
    %19 = vector.load %arg5[%c0_13, %c0_14] : memref<1x1xf32, #tpu.memory_space<vmem>>, vector<1x1xf32>
    %20 = vector.broadcast %19 : vector<1x1xf32> to vector<1x8xf32>
    %21 = arith.addf %18, %20 : vector<1x8xf32>
    %c0_15 = arith.constant 0 : index
    %c0_16 = arith.constant 0 : index
    %22 = vector.load %arg6[%c0_15, %c0_16] : memref<1x8xf32, #tpu.memory_space<vmem>>, vector<1x8xf32>
    tpu.vector_store %arg6[%c0_15, %c0_16], %21 {strides = array<i32>} : memref<1x8xf32, #tpu.memory_space<vmem>>, vector<1x8xf32>,
    return
  }
  func.func @transform_0(%arg0: i32) -> (i32, i32) {
    %c0_i32 = arith.constant 0 : i32
    %c0_i32_0 = arith.constant 0 : i32
    return %arg0, %c0_i32 : i32, i32
  }
  func.func @transform_1(%arg0: i32) -> (i32, i32) {
    %c0_i32 = arith.constant 0 : i32
    %c0_i32_0 = arith.constant 0 : i32
    %c0_i32_1 = arith.constant 0 : i32
    return %c0_i32, %c0_i32_0 : i32, i32
  }
  func.func @transform_2(%arg0: i32) -> (i32, i32) {
    %c0_i32 = arith.constant 0 : i32
    %c0_i32_0 = arith.constant 0 : i32
    %c0_i32_1 = arith.constant 0 : i32
    return %c0_i32, %c0_i32_0 : i32, i32
  }
  func.func @transform_3(%arg0: i32) -> (i32, i32) {
    %c0_i32 = arith.constant 0 : i32
    %c0_i32_0 = arith.constant 0 : i32
    %c0_i32_1 = arith.constant 0 : i32
    return %c0_i32, %c0_i32_0 : i32, i32
  }
  func.func @transform_4(%arg0: i32) -> (i32, i32) {
    %c0_i32 = arith.constant 0 : i32
    %c0_i32_0 = arith.constant 0 : i32
    %c0_i32_1 = arith.constant 0 : i32
    return %c0_i32, %c0_i32_0 : i32, i32
  }
  func.func @transform_5(%arg0: i32) -> (i32, i32) {
    %c0_i32 = arith.constant 0 : i32
    %c0_i32_0 = arith.constant 0 : i32
    return %c0_i32, %arg0 : i32, i32
  }
}

</mosaic_0001>

<llo_original>
// kernel: tpu_custom_call.1
$region0: #{tpu_custom_call.1}
  #allocation0 [shape = 'u32[]', space=smem, size = 0x4, offset = 0x4, fixed_abs, tag = 'smem constant byte address 0x4 - core index']
  #allocation1 [shape = 'u32[144,128]{1,0:T(1,128)}', space=vmem, size = 0x12000, scoped, tag = 'internal scratch']
  #allocation2 [shape = 'f32[1,1]{1,0:T(1,128)S(1)}', space=vmem, size = 0x200, scoped, tag = 'scoped memory for tpu_custom_call.1']
  %s0 = inlined_call_operand.hbm [shape: f32[8,64], index: 0, kind: input, shape index: {}]
  %s1 = inlined_call_operand.hbm [shape: f32[32,64], index: 1, kind: input, shape index: {}]
  %s2 = inlined_call_operand.vmem [shape: f32[1,32], index: 2, kind: input, shape index: {}]
  %s3 = inlined_call_operand.vmem [shape: f32[1,32], index: 3, kind: input, shape index: {}]
  %s4 = inlined_call_operand.<no memory space> [shape: f32[1,1], index: 4, kind: input, shape index: {}]
  %s5 = inlined_call_operand.hbm [shape: f32[1,8], index: 5, kind: output, shape index: {}]
  %s6 = sld [smem:[#allocation0]]
  $region38: #{tpu_custom_call.1} parent=0
    _
  %s8 = ssub.s32 1, %s6
  %s9 = scalar_select 0, %s8, %s6
  %v10 = vstv %s4
  %11 = vst [vmem:[#allocation2] sm:$0x1] %v10
  $region1: #{tpu_custom_call.1} parent=0
    #allocation3 [shape = 'u8[4096]{0}', space=vmem, size = 0x1000, scoped, tag = 'input window, operand 0, single buffered']
    #allocation4 [shape = 's32[1]{0}', space=sflag, size = 0x4, scoped, tag = 'scoped memory for tpu_custom_call.1']
    #allocation5 [shape = 's32[1]{0}', space=sflag, size = 0x4, scoped, tag = 'scoped memory for tpu_custom_call.1']
    #allocation6 [shape = 'u8[16384]{0}', space=vmem, size = 0x4000, scoped, tag = 'input window, operand 1, single buffered']
    #allocation7 [shape = 's32[1]{0}', space=sflag, size = 0x4, scoped, tag = 'scoped memory for tpu_custom_call.1']
    #allocation8 [shape = 'u8[512]{0}', space=vmem, size = 0x400, scoped, tag = 'output window, operand 0, single buffered']
    %12 = vsyncpa [#allocation4], 0
    %13 = vsyncpa [#allocation7], 0
    %14 = vsyncpa [#allocation5], 0
    // Predicated region
    $region2: #{tpu_custom_call.1} parent=1 // pred_check
      _
    $region3: #{tpu_custom_call.1} parent=1 // pred_check_branch
      %16 = sbr.rel (0) target = $region5
    $region4: #{tpu_custom_call.1} parent=1 // pred_region
      %s18 = ssub.s32 128, 128
      %19 = vsyncadd [#allocation4], %s18
      %s21 = sshll.u32 [#allocation3], 4
      %s22 = int_to_ptr.vmem [resolvable:$true] %s21
      %24 = dma.hbm_to_vmem [thread:$0]  %s0, 128, %s22, [#allocation4]
    $region5: #{tpu_custom_call.1} parent=1 // pred_fallthru
      _
    // Predicated region
    $region6: #{tpu_custom_call.1} parent=1 // pred_check
      _
    $region7: #{tpu_custom_call.1} parent=1 // pred_check_branch
      %26 = sbr.rel (0) target = $region9
    $region8: #{tpu_custom_call.1} parent=1 // pred_region
      %s28 = ssub.s32 512, 512
      %29 = vsyncadd [#allocation7], %s28
      %s30 = sshll.u32 [#allocation6], 4
      %s31 = int_to_ptr.vmem [resolvable:$true] %s30
      %36 = dma.hbm_to_vmem [thread:$0]  %s1, 512, %s31, [#allocation7], 128, 128, 8
    $region9: #{tpu_custom_call.1} parent=1 // pred_fallthru
      _
    // Predicated region
    $region10: #{tpu_custom_call.1} parent=1 // pred_check
      _
    $region11: #{tpu_custom_call.1} parent=1 // pred_check_branch
      %38 = sbr.rel (0) target = $region13
    $region12: #{tpu_custom_call.1} parent=1 // pred_region
      _
    $region13: #{tpu_custom_call.1} parent=1 // pred_fallthru
      _
    // Predicated region
    $region14: #{tpu_custom_call.1} parent=1 // pred_check
      _
    $region15: #{tpu_custom_call.1} parent=1 // pred_check_branch
      %40 = sbr.rel (0) target = $region17
    $region16: #{tpu_custom_call.1} parent=1 // pred_region
      _
    $region17: #{tpu_custom_call.1} parent=1 // pred_fallthru
      _
    // Predicated region
    $region18: #{tpu_custom_call.1} parent=1 // pred_check
      _
    $region19: #{tpu_custom_call.1} parent=1 // pred_check_branch
      %42 = sbr.rel (0) target = $region21
    $region20: #{tpu_custom_call.1} parent=1 // pred_region
      _
    $region21: #{tpu_custom_call.1} parent=1 // pred_fallthru
      _
    // Predicated region
    $region22: #{tpu_custom_call.1} parent=1 // pred_check
      _
    $region23: #{tpu_custom_call.1} parent=1 // pred_check_branch
      %44 = sbr.rel (0) target = $region25
    $region24: #{tpu_custom_call.1} parent=1 // pred_region
      %45 = dma.done [#allocation4], 128
    $region25: #{tpu_custom_call.1} parent=1 // pred_fallthru
      _
    // Predicated region
    $region26: #{tpu_custom_call.1} parent=1 // pred_check
      _
    $region27: #{tpu_custom_call.1} parent=1 // pred_check_branch
      %47 = sbr.rel (0) target = $region29
    $region28: #{tpu_custom_call.1} parent=1 // pred_region
      %48 = dma.done [#allocation7], 512
    $region29: #{tpu_custom_call.1} parent=1 // pred_fallthru
      _
    %v49 = vld [vmem:[#allocation3] sm:$0xff]
    %v50 = vld [vmem:[#allocation6] sm:$0xff]
    %v51 = vld [vmem:[#allocation6 + $0x8] sm:$0xff]
    %v52 = vld [vmem:[#allocation6 + $0x10] sm:$0xff]
    %v53 = vld [vmem:[#allocation6 + $0x18] sm:$0xff]
    %vm54 = vcmask 523264
    %v56 = vsel %vm54, %v49, 0
    %v59 = vsel %vm54, %v50, 0
    %v62 = vsel %vm54, %v51, 0
    %v65 = vsel %vm54, %v52, 0
    %v68 = vsel %vm54, %v53, 0
    %70 = vmatprep.subr.mxu0 0.0
    %71 = vmatpush1.xpose.msra.mxu0 0.0
    %72 = vmatprep.subr.mxu0 0.0
    %73 = vmatpush1.xpose.msra.mxu0 0.0
    %74 = vmatprep.subr.mxu0 0.0
    %75 = vmatpush1.xpose.msra.mxu0 0.0
    %76 = vmatprep.subr.mxu0 0.0
    %77 = vmatpush1.xpose.msra.mxu0 0.0
    %78 = vmatprep.subr.mxu0 0.0
    %79 = vmatpush1.xpose.msra.mxu0 0.0
    %80 = vmatprep.subr.mxu0 0.0
    %81 = vmatpush1.xpose.msra.mxu0 0.0
    %82 = vmatprep.subr.mxu0 0.0
    %83 = vmatpush1.xpose.msra.mxu0 0.0
    %84 = vmatprep.subr.mxu0 0.0
    %85 = vmatpush1.xpose.msra.mxu0 0.0
    %86 = vmatprep.subr.mxu0 0.0
    %87 = vmatpush1.xpose.msra.mxu0 0.0
    %88 = vmatprep.subr.mxu0 0.0
    %89 = vmatpush1.xpose.msra.mxu0 0.0
    %90 = vmatprep.subr.mxu0 0.0
    %91 = vmatpush1.xpose.msra.mxu0 0.0
    %92 = vmatprep.subr.mxu0 0.0
    %93 = vmatpush1.xpose.msra.mxu0 0.0
    %94 = vmatprep.subr.mxu0 0.0
    %95 = vmatpush1.xpose.msra.mxu0 %v68
    %96 = vmatprep.subr.mxu0 0.0
    %97 = vmatpush1.xpose.msra.mxu0 %v65
    %98 = vmatprep.subr.mxu0 0.0
    %99 = vmatpush1.xpose.msra.mxu0 %v62
    %100 = vmatprep.subr.mxu0 0.0
    %101 = vmatpush1.xpose.msra.mxu0 %v59
    %102 = vmatprep.subr.mxu0 0.0
    %103 = vmatpush2.xpose.msra.mxu0 0.0
    %104 = vmatprep.subr.mxu0 0.0
    %105 = vmatpush2.xpose.msra.mxu0 0.0
    %106 = vmatprep.subr.mxu0 0.0
    %107 = vmatpush2.xpose.msra.mxu0 0.0
    %108 = vmatprep.subr.mxu0 0.0
    %109 = vmatpush2.xpose.msra.mxu0 0.0
    %110 = vmatprep.subr.mxu0 0.0
    %111 = vmatpush2.xpose.msra.mxu0 0.0
    %112 = vmatprep.subr.mxu0 0.0
    %113 = vmatpush2.xpose.msra.mxu0 0.0
    %114 = vmatprep.subr.mxu0 0.0
    %115 = vmatpush2.xpose.msra.mxu0 0.0
    %116 = vmatprep.subr.mxu0 0.0
    %117 = vmatpush2.xpose.msra.mxu0 0.0
    %118 = vmatprep.subr.mxu0 0.0
    %119 = vmatpush2.xpose.msra.mxu0 0.0
    %120 = vmatprep.subr.mxu0 0.0
    %121 = vmatpush2.xpose.msra.mxu0 0.0
    %122 = vmatprep.subr.mxu0 0.0
    %123 = vmatpush2.xpose.msra.mxu0 0.0
    %124 = vmatprep.subr.mxu0 0.0
    %125 = vmatpush2.xpose.msra.mxu0 0.0
    %126 = vmatprep.subr.mxu0 0.0
    %127 = vmatpush2.xpose.msra.mxu0 0.0
    %128 = vmatprep.subr.mxu0 0.0
    %129 = vmatpush2.xpose.msra.mxu0 0.0
    %130 = vmatprep.subr.mxu0 0.0
    %131 = vmatpush2.xpose.msra.mxu0 0.0
    %132 = vmatprep.subr.mxu0 0.0
    %133 = vmatpush2.xpose.msra.mxu0 0.0
    %134 = vmatprep.mubr.f32.mxu0 0.0
    %135 = vmatmul.mubr.f32.gmra.mxu0 %v56
    %v136 = vpop.f32.mrf.mxu0
    %v137 = vadd.f32 0.0, %v136
    %v138 = vpop.f32.mrf.mxu0
    %139 = vdwg.mxu0
    %v140 = vmul.f32 %v137, 0.125
    %v141 = vld [vmem:[%s2] sm:$0x1]
    %v143 = vlaneseq
    %v144 = vshrl.u32 %v143, 7
    %v145 = vsub.s32 0, %v144
    %v146 = vrot.slane %v141, %v145
    %v148 = vadd.f32 %v140, %v146
    %vm149 = vcmp.ge.f32.partialorder %v148, 0.0
    %v150 = vmul.f32 %v148, 1.4142135
    %v151 = vmul.f32 %v148, 0.28284273
    %v152 = vsel %vm149, %v150, %v151
    %v153 = vld [vmem:[%s3] sm:$0x1]
    %vm154 = vcmask 261120
    %v156 = vsel %vm154, %v153, 0
    %v159 = vsel %vm154, %v152, 0
    %161 = vmatprep.subr.mxu0 0.0
    %162 = vmatpush1.xpose.msra.mxu0 0.0
    %163 = vmatprep.subr.mxu0 0.0
    %164 = vmatpush1.xpose.msra.mxu0 0.0
    %165 = vmatprep.subr.mxu0 0.0
    %166 = vmatpush1.xpose.msra.mxu0 0.0
    %167 = vmatprep.subr.mxu0 0.0
    %168 = vmatpush1.xpose.msra.mxu0 0.0
    %169 = vmatprep.subr.mxu0 0.0
    %170 = vmatpush1.xpose.msra.mxu0 0.0
    %171 = vmatprep.subr.mxu0 0.0
    %172 = vmatpush1.xpose.msra.mxu0 0.0
    %173 = vmatprep.subr.mxu0 0.0
    %174 = vmatpush1.xpose.msra.mxu0 0.0
    %175 = vmatprep.subr.mxu0 0.0
    %176 = vmatpush1.xpose.msra.mxu0 0.0
    %177 = vmatprep.subr.mxu0 0.0
    %178 = vmatpush1.xpose.msra.mxu0 0.0
    %179 = vmatprep.subr.mxu0 0.0
    %180 = vmatpush1.xpose.msra.mxu0 0.0
    %181 = vmatprep.subr.mxu0 0.0
    %182 = vmatpush1.xpose.msra.mxu0 0.0
    %183 = vmatprep.subr.mxu0 0.0
    %184 = vmatpush1.xpose.msra.mxu0 0.0
    %185 = vmatprep.subr.mxu0 0.0
    %186 = vmatpush1.xpose.msra.mxu0 0.0
    %187 = vmatprep.subr.mxu0 0.0
    %188 = vmatpush1.xpose.msra.mxu0 0.0
    %189 = vmatprep.subr.mxu0 0.0
    %190 = vmatpush1.xpose.msra.mxu0 0.0
    %191 = vmatprep.subr.mxu0 0.0
    %192 = vmatpush1.xpose.msra.mxu0 %v159
    %193 = vmatprep.subr.mxu0 0.0
    %194 = vmatpush2.xpose.msra.mxu0 0.0
    %195 = vmatprep.subr.mxu0 0.0
    %196 = vmatpush2.xpose.msra.mxu0 0.0
    %197 = vmatprep.subr.mxu0 0.0
    %198 = vmatpush2.xpose.msra.mxu0 0.0
    %199 = vmatprep.subr.mxu0 0.0
    %200 = vmatpush2.xpose.msra.mxu0 0.0
    %201 = vmatprep.subr.mxu0 0.0
    %202 = vmatpush2.xpose.msra.mxu0 0.0
    %203 = vmatprep.subr.mxu0 0.0
    %204 = vmatpush2.xpose.msra.mxu0 0.0
    %205 = vmatprep.subr.mxu0 0.0
    %206 = vmatpush2.xpose.msra.mxu0 0.0
    %207 = vmatprep.subr.mxu0 0.0
    %208 = vmatpush2.xpose.msra.mxu0 0.0
    %209 = vmatprep.subr.mxu0 0.0
    %210 = vmatpush2.xpose.msra.mxu0 0.0
    %211 = vmatprep.subr.mxu0 0.0
    %212 = vmatpush2.xpose.msra.mxu0 0.0
    %213 = vmatprep.subr.mxu0 0.0
    %214 = vmatpush2.xpose.msra.mxu0 0.0
    %215 = vmatprep.subr.mxu0 0.0
    %216 = vmatpush2.xpose.msra.mxu0 0.0
    %217 = vmatprep.subr.mxu0 0.0
    %218 = vmatpush2.xpose.msra.mxu0 0.0
    %219 = vmatprep.subr.mxu0 0.0
    %220 = vmatpush2.xpose.msra.mxu0 0.0
    %221 = vmatprep.subr.mxu0 0.0
    %222 = vmatpush2.xpose.msra.mxu0 0.0
    %223 = vmatprep.subr.mxu0 0.0
    %224 = vmatpush2.xpose.msra.mxu0 0.0
    %225 = vmatprep.mubr.f32.mxu0 0.0
    %226 = vmatmul.mubr.f32.gmra.mxu0 %v156
    %v227 = vpop.f32.mrf.mxu0
    %v228 = vadd.f32 0.0, %v227
    %v229 = vpop.f32.mrf.mxu0
    %230 = vdwg.mxu0
    %v231 = vmul.f32 %v228, 0.17677669
    %v232 = vld [vmem:[#allocation2] sm:$0x1]
    %234 = vset.pattern.permute.xlu0 0
    %235 = vperm.xlu0 %234, %v232
    %v236 = vpop.permute.xlu0 %235
    %v238 = vlaneseq
    %v239 = vshrl.u32 %v238, 7
    %v240 = vsub.s32 0, %v239
    %v241 = vrot.slane %v236, %v240
    %v242 = vadd.f32 %v231, %v241
    %vm243 = vcmask 57344
    %244 = vst.msk [vmem:[#allocation8] sm:$0x1] %vm243, %v242
    // Predicated region
    $region30: #{tpu_custom_call.1} parent=1 // pred_check
      _
    $region31: #{tpu_custom_call.1} parent=1 // pred_check_branch
      %246 = sbr.rel (0) target = $region33
    $region32: #{tpu_custom_call.1} parent=1 // pred_region
      %s248 = ssub.s32 16, 16
      %249 = vsyncadd [#allocation5], %s248
      %s251 = sshll.u32 [#allocation8], 4
      %s252 = int_to_ptr.vmem [resolvable:$true] %s251
      %254 = dma.vmem_to_hbm [thread:$0]  %s252, 16, %s5, [#allocation5]
    $region33: #{tpu_custom_call.1} parent=1 // pred_fallthru
      _
    // Predicated region
    $region34: #{tpu_custom_call.1} parent=1 // pred_check
      _
    $region35: #{tpu_custom_call.1} parent=1 // pred_check_branch
      %256 = sbr.rel (0) target = $region37
    $region36: #{tpu_custom_call.1} parent=1 // pred_region
      %257 = dma.done [#allocation5], 16
    $region37: #{tpu_custom_call.1} parent=1 // pred_fallthru
      _
    %258 = vsyncpa [#allocation4], 1
    %259 = vsyncpa [#allocation7], 1
    %260 = vsyncpa [#allocation5], 1

</llo_original>
